<compile_context>
chip_gen: v6e
topology: v6e:2x2x1
jax: 0.10.0
libtpu: 0.0.40
codegen_flags: <defaults>
</compile_context>

<pallas_src>
import functools
import math

import jax
import jax.numpy as jnp
from jax.experimental import pallas as pl
from jax.experimental.pallas import tpu as pltpu

_NEG_INF = -1e30  # finite "-inf": keeps exp() NaN-free in the online softmax


# ----------------------------------------------------------------------------
# Kernel 1: tiled bias-add linear layer  y = x @ W^T + b
#   x: (M, K), W: (N, K) [PyTorch nn.Linear layout], b: (N,) -> y: (M, N)
# The wrapper pre-transposes W to (K, N) once (weights are static; amortized /
# constant-folded under jit), so the kernel is a plain (M,K)x(K,N) MXU matmul
# with a lane-dense (multiple-of-128) rhs and output tile.
# ----------------------------------------------------------------------------
def _linear_kernel(x_ref, wt_ref, b_ref, o_ref):
    y = jnp.dot(x_ref[...], wt_ref[...], preferred_element_type=jnp.float32)
    o_ref[...] = (y + b_ref[...]).astype(o_ref.dtype)


def linear(x, w, b, *, tm=512, tn=512):
    M, K = x.shape
    N, _ = w.shape
    tm = min(tm, M)          # full block if small, else 512 (multiple of 8)
    tn = min(tn, N)          # full block if small, else 512 (multiple of 128)
    wt = w.T                 # (K, N): done once; static weight, amortized
    grid = (pl.cdiv(M, tm), pl.cdiv(N, tn))
    # TODO(synk): for very large C (>= 4096) add a K grid axis ("arbitrary",
    # last) with an f32 accumulator scratch so the (tm,K)/(K,tn) pair fits
    # v7x's 64 MiB VMEM; un-tiled K is fine at GPT-2 scale (C = 768).
    return pl.pallas_call(
        _linear_kernel,
        out_shape=jax.ShapeDtypeStruct((M, N), x.dtype),
        grid_spec=pltpu.PrefetchScalarGridSpec(
            num_scalar_prefetch=0,
            grid=grid,
            in_specs=[
                pl.BlockSpec((tm, K), lambda i, j: (i, 0)),
                pl.BlockSpec((K, tn), lambda i, j: (0, j)),
                pl.BlockSpec((1, tn), lambda i, j: (0, j)),
            ],
            out_specs=pl.BlockSpec((tm, tn), lambda i, j: (i, j)),
        ),
        compiler_params=pltpu.CompilerParams(
            dimension_semantics=("parallel", "parallel"),
            vmem_limit_bytes=32 * 1024 * 1024),
    )(x, wt, b.reshape(1, N))


# ----------------------------------------------------------------------------
# Kernel 2: KV-resident flash-style causal attention
#   q, k, v: (B, H, T, D) -> y: (B, H, T, D)
# Grid (B, H, T//tq).  K/V blocks span the full sequence and their index_map
# ignores the q-tile index, so they stay resident in VMEM for all q tiles of a
# (b, h) pair.  The kv reduction is an in-kernel loop over `ck`-sized chunks,
# bounded by the causal diagonal; only the diagonal chunks are masked.
# ----------------------------------------------------------------------------
def _flash_attn_kernel(q_ref, k_ref, v_ref, o_ref, m_ref, l_ref, acc_ref, *, ck):
    qi = pl.program_id(2)
    tq, d = q_ref.shape[2], q_ref.shape[3]
    scale = 1.0 / math.sqrt(d)

    q_start = qi * tq
    n_full = q_start // ck          # chunks entirely below the diagonal (unmasked)

    m_ref[...] = jnp.full_like(m_ref, _NEG_INF)
    l_ref[...] = jnp.zeros_like(l_ref)
    acc_ref[...] = jnp.zeros_like(acc_ref)

    q = q_ref[0, 0] * scale         # (tq, d), input dtype; scaled once per q tile

    def step(c, masked):
        k_start = c * ck
        k_off = pl.multiple_of(k_start, ck)
        k = k_ref[0, 0, pl.ds(k_off, ck), :]       # (ck, d), VMEM-resident
        v = v_ref[0, 0, pl.ds(k_off, ck), :]       # (ck, d)

        # scores = (q*scale) @ k^T   (MXU, f32 accumulate, no operand up-cast)
        s = jax.lax.dot_general(
            q, k, dimension_numbers=(((1,), (1,)), ((), ())),
            preferred_element_type=jnp.float32)     # (tq, ck)

        if masked:
            # Only diagonal-straddling chunks pay for the mask; finite fill
            # keeps the online-softmax rescale NaN-free for masked rows.
            row = q_start + jax.lax.broadcasted_iota(jnp.int32, (tq, ck), 0)
            col = k_start + jax.lax.broadcasted_iota(jnp.int32, (tq, ck), 1)
            s = jnp.where(col <= row, s, _NEG_INF)

        m_prev = m_ref[...]                                   # (tq, 1) f32
        m_new = jnp.maximum(m_prev, jnp.max(s, axis=-1, keepdims=True))
        alpha = jnp.exp(m_prev - m_new)                       # rescale factor
        p = jnp.exp(s - m_new)                                # (tq, ck) f32

        l_ref[...] = alpha * l_ref[...] + jnp.sum(p, axis=-1, keepdims=True)
        acc_ref[...] = alpha * acc_ref[...] + jnp.dot(
            p.astype(v.dtype), v, preferred_element_type=jnp.float32)
        m_ref[...] = m_new

    # Chunks fully below the diagonal: no mask work, dynamic trip count.
    @pl.loop(0, n_full)
    def _unmasked(c):
        step(c, masked=False)

    # Chunks straddling the diagonal: exactly tq // ck of them, unrolled.
    for j in range(tq // ck):
        step(n_full + j, masked=True)

    # Exact divide keeps 1e-5 parity with the reference; pl.reciprocal(...,
    # approx=True) would move it to the otherwise-idle EUP slot.
    o_ref[0, 0] = (acc_ref[...] / l_ref[...]).astype(o_ref.dtype)


def causal_attention(q, k, v, *, tq=256, chunk=256):
    B, H, T, D = q.shape
    tq = min(tq, T)
    ck = min(chunk, tq)
    assert T % tq == 0 and tq % ck == 0, "T must be divisible by tq, tq by chunk"
    grid = (B, H, T // tq)

    q_spec = pl.BlockSpec((1, 1, tq, D), lambda b, h, qi: (b, h, qi, 0))
    # Full-sequence K/V block; index_map ignores qi => fetched once per (b, h)
    # and kept VMEM-resident across all q tiles (Pallas skips the re-DMA when
    # the block index does not change between consecutive grid steps).
    kv_spec = pl.BlockSpec((1, 1, T, D), lambda b, h, qi: (b, h, 0, 0))

    return pl.pallas_call(
        functools.partial(_flash_attn_kernel, ck=ck),
        out_shape=jax.ShapeDtypeStruct((B, H, T, D), q.dtype),
        grid_spec=pltpu.PrefetchScalarGridSpec(
            num_scalar_prefetch=0,
            grid=grid,
            in_specs=[q_spec, kv_spec, kv_spec],
            out_specs=q_spec,
            scratch_shapes=[
                pltpu.VMEM((tq, 1), jnp.float32),   # running max
                pltpu.VMEM((tq, 1), jnp.float32),   # running sum
                pltpu.VMEM((tq, D), jnp.float32),   # f32 output accumulator
            ]),
        compiler_params=pltpu.CompilerParams(
            # No cross-step reduction axis anymore; B leads (balanced 2-TC
            # split on v7x).  Re-budget vmem_limit_bytes for very long T.
            dimension_semantics=("parallel", "parallel", "parallel"),
            vmem_limit_bytes=32 * 1024 * 1024),
    )(q, k, v)


# ----------------------------------------------------------------------------
# Module-equivalent forward
# ----------------------------------------------------------------------------
def causal_self_attention_forward(x, params, n_head):
    B, T, C = x.shape
    hd = C // n_head

    # c_attn: (B*T, C) -> (B*T, 3C)
    qkv = linear(x.reshape(B * T, C), params["w_attn"], params["b_attn"])
    qkv = qkv.reshape(B, T, 3, n_head, hd)

    # TODO(synk): fold these layout transposes into the producing/consuming
    # kernels (head-major c_attn output + two-heads-per-tile lane packing in
    # the attention kernel) to drop ~3-4 full-tensor HBM round trips; blocked
    # for now by the (8,128) BlockSpec lane constraint at head_dim < 128.
    q = qkv[:, :, 0].transpose(0, 2, 1, 3)            # (B, H, T, hd)
    k = qkv[:, :, 1].transpose(0, 2, 1, 3)
    v = qkv[:, :, 2].transpose(0, 2, 1, 3)

    y = causal_attention(q, k, v)                     # (B, H, T, hd)
    y = y.transpose(0, 2, 1, 3).reshape(B * T, C)

    # c_proj: (B*T, C) -> (B*T, C)
    y = linear(y, params["w_proj"], params["b_proj"])
    return y.reshape(B, T, C)


# ----------------------------------------------------------------------------
# Pure-JAX reference for the correctness check
# ----------------------------------------------------------------------------
def reference_forward(x, params, n_head):
    B, T, C = x.shape
    hd = C // n_head
    qkv = x @ params["w_attn"].T + params["b_attn"]
    q, k, v = jnp.split(qkv, 3, axis=2)
    q = q.reshape(B, T, n_head, hd).transpose(0, 2, 1, 3)
    k = k.reshape(B, T, n_head, hd).transpose(0, 2, 1, 3)
    v = v.reshape(B, T, n_head, hd).transpose(0, 2, 1, 3)
    att = (q @ jnp.swapaxes(k, -2, -1)) * (1.0 / math.sqrt(hd))
    mask = jnp.tril(jnp.ones((T, T), dtype=bool))
    att = jnp.where(mask[None, None], att, -jnp.inf)
    att = jax.nn.softmax(att, axis=-1)
    y = att @ v
    y = y.transpose(0, 2, 1, 3).reshape(B, T, C)
    return y @ params["w_proj"].T + params["b_proj"]


if __name__ == "__main__":
    # Small config: B=2, T=8 (block_size=8), C=n_embd=32, n_head=4, dropout=0.0
    B, T, C, n_head = 2, 8, 32, 4

    key = jax.random.PRNGKey(0)
    kx, kw1, kb1, kw2, kb2 = jax.random.split(key, 5)

    x = jax.random.normal(kx, (B, T, C), dtype=jnp.float32)

    bound1 = 1.0 / math.sqrt(C)
    params = {
        "w_attn": jax.random.uniform(kw1, (3 * C, C), jnp.float32, -bound1, bound1),
        "b_attn": jax.random.uniform(kb1, (3 * C,), jnp.float32, -bound1, bound1),
        "w_proj": jax.random.uniform(kw2, (C, C), jnp.float32, -bound1, bound1),
        "b_proj": jax.random.uniform(kb2, (C,), jnp.float32, -bound1, bound1),
    }

    y = causal_self_attention_forward(x, params, n_head)
    y = jax.block_until_ready(y)

    y_ref = reference_forward(x, params, n_head)
    assert y.shape == (B, T, C)
    assert jnp.allclose(y, y_ref, atol=1e-5, rtol=1e-5), "mismatch vs reference"

    print("KERNEL_OK")
</pallas_src>

<mosaic_0001>
module attributes {stable_mosaic.version = 11 : i64} {
  func.func @_linear_kernel(%arg0: i32, %arg1: i32, %arg2: memref<16x32xf32, #tpu.memory_space<vmem>>, %arg3: memref<32x96xf32, #tpu.memory_space<vmem>>, %arg4: memref<1x96xf32, #tpu.memory_space<vmem>>, %arg5: memref<16x96xf32, #tpu.memory_space<vmem>>) attributes {dimension_semantics = [#tpu.dimension_semantics<parallel>, #tpu.dimension_semantics<parallel>], iteration_bounds = array<i64: 1, 1>, scalar_prefetch = 0 : i64, scratch_operands = 0 : i64, tpu.core_type = #tpu.core_type<tc>, window_params = [{transform_indices = @transform_0, window_bounds = array<i64: 16, 32>}, {transform_indices = @transform_1, window_bounds = array<i64: 32, 96>}, {transform_indices = @transform_2, window_bounds = array<i64: 1, 96>}, {transform_indices = @transform_3, window_bounds = array<i64: 16, 96>}]} {
    %c0 = arith.constant 0 : index
    %c0_0 = arith.constant 0 : index
    %0 = vector.load %arg2[%c0, %c0_0] : memref<16x32xf32, #tpu.memory_space<vmem>>, vector<16x32xf32>
    %c0_1 = arith.constant 0 : index
    %c0_2 = arith.constant 0 : index
    %1 = vector.load %arg3[%c0_1, %c0_2] : memref<32x96xf32, #tpu.memory_space<vmem>>, vector<32x96xf32>
    %cst = arith.constant dense<0.000000e+00> : vector<16x96xf32>
    %2 = tpu.matmul %0, %1, %cst {dimension_numbers = #tpu.dot_dimension_numbers<[1], [0], [0], [1], [0, 0, 1, 1], [], []>} : vector<16x32xf32>, vector<32x96xf32>, vector<16x96xf32> -> vector<16x96xf32>
    %c0_3 = arith.constant 0 : index
    %c0_4 = arith.constant 0 : index
    %3 = vector.load %arg4[%c0_3, %c0_4] : memref<1x96xf32, #tpu.memory_space<vmem>>, vector<1x96xf32>
    %4 = vector.broadcast %3 : vector<1x96xf32> to vector<16x96xf32>
    %5 = arith.addf %2, %4 : vector<16x96xf32>
    %c0_5 = arith.constant 0 : index
    %c0_6 = arith.constant 0 : index
    %6 = vector.load %arg5[%c0_5, %c0_6] : memref<16x96xf32, #tpu.memory_space<vmem>>, vector<16x96xf32>
    tpu.vector_store %arg5[%c0_5, %c0_6], %5 {strides = array<i32>} : memref<16x96xf32, #tpu.memory_space<vmem>>, vector<16x96xf32>,
    return
  }
  func.func @transform_0(%arg0: i32, %arg1: i32) -> (i32, i32) {
    %c0_i32 = arith.constant 0 : i32
    %c0_i32_0 = arith.constant 0 : i32
    return %arg0, %c0_i32 : i32, i32
  }
  func.func @transform_1(%arg0: i32, %arg1: i32) -> (i32, i32) {
    %c0_i32 = arith.constant 0 : i32
    %c0_i32_0 = arith.constant 0 : i32
    return %c0_i32, %arg1 : i32, i32
  }
  func.func @transform_2(%arg0: i32, %arg1: i32) -> (i32, i32) {
    %c0_i32 = arith.constant 0 : i32
    %c0_i32_0 = arith.constant 0 : i32
    return %c0_i32, %arg1 : i32, i32
  }
  func.func @transform_3(%arg0: i32, %arg1: i32) -> (i32, i32) {
    %c0_i32 = arith.constant 0 : i32
    return %arg0, %arg1 : i32, i32
  }
}

</mosaic_0001>

<llo_original>
// kernel: tpu_custom_call.1
$region0: #{tpu_custom_call.1}
  #allocation0 [shape = 'u32[]', space=smem, size = 0x4, offset = 0x4, fixed_abs, tag = 'smem constant byte address 0x4 - core index']
  #allocation1 [shape = 'u32[144,128]{1,0:T(1,128)}', space=vmem, size = 0x12000, scoped, tag = 'internal scratch']
  %s0 = inlined_call_operand.hbm [shape: f32[16,32], index: 0, kind: input, shape index: {}]
  %s1 = inlined_call_operand.hbm [shape: f32[32,96], index: 1, kind: input, shape index: {}]
  %s2 = inlined_call_operand.vmem [shape: f32[1,96], index: 2, kind: input, shape index: {}]
  %s3 = inlined_call_operand.hbm [shape: f32[16,96], index: 3, kind: output, shape index: {}]
  %s4 = sld [smem:[#allocation0]]
  $region30: #{tpu_custom_call.1} parent=0
    _
  %s6 = ssub.s32 1, %s4
  %s7 = scalar_select 0, %s6, %s4
  $region1: #{tpu_custom_call.1} parent=0
    #allocation2 [shape = 'u8[8192]{0}', space=vmem, size = 0x2000, scoped, tag = 'input window, operand 0, single buffered']
    #allocation3 [shape = 's32[1]{0}', space=sflag, size = 0x4, scoped, tag = 'scoped memory for tpu_custom_call.1']
    #allocation4 [shape = 's32[1]{0}', space=sflag, size = 0x4, scoped, tag = 'scoped memory for tpu_custom_call.1']
    #allocation5 [shape = 'u8[16384]{0}', space=vmem, size = 0x4000, scoped, tag = 'input window, operand 1, single buffered']
    #allocation6 [shape = 's32[1]{0}', space=sflag, size = 0x4, scoped, tag = 'scoped memory for tpu_custom_call.1']
    #allocation7 [shape = 'u8[8192]{0}', space=vmem, size = 0x2000, scoped, tag = 'output window, operand 0, single buffered']
    %8 = vsyncpa [#allocation3], 0
    %9 = vsyncpa [#allocation6], 0
    %10 = vsyncpa [#allocation4], 0
    // Predicated region
    $region2: #{tpu_custom_call.1} parent=1 // pred_check
      _
    $region3: #{tpu_custom_call.1} parent=1 // pred_check_branch
      %12 = sbr.rel (0) target = $region5
    $region4: #{tpu_custom_call.1} parent=1 // pred_region
      %s14 = ssub.s32 256, 256
      %15 = vsyncadd [#allocation3], %s14
      %s16 = sshll.u32 [#allocation2], 4
      %s17 = int_to_ptr.vmem [resolvable:$true] %s16
      %22 = dma.hbm_to_vmem [thread:$0]  %s0, 256, %s17, [#allocation3], 128, 128, 8
    $region5: #{tpu_custom_call.1} parent=1 // pred_fallthru
      _
    // Predicated region
    $region6: #{tpu_custom_call.1} parent=1 // pred_check
      _
    $region7: #{tpu_custom_call.1} parent=1 // pred_check_branch
      %24 = sbr.rel (0) target = $region9
    $region8: #{tpu_custom_call.1} parent=1 // pred_region
      %s26 = ssub.s32 512, 512
      %27 = vsyncadd [#allocation6], %s26
      %s28 = sshll.u32 [#allocation5], 4
      %s29 = int_to_ptr.vmem [resolvable:$true] %s28
      %34 = dma.hbm_to_vmem [thread:$0]  %s1, 512, %s29, [#allocation6], 128, 128, 8
    $region9: #{tpu_custom_call.1} parent=1 // pred_fallthru
      _
    // Predicated region
    $region10: #{tpu_custom_call.1} parent=1 // pred_check
      _
    $region11: #{tpu_custom_call.1} parent=1 // pred_check_branch
      %36 = sbr.rel (0) target = $region13
    $region12: #{tpu_custom_call.1} parent=1 // pred_region
      _
    $region13: #{tpu_custom_call.1} parent=1 // pred_fallthru
      _
    // Predicated region
    $region14: #{tpu_custom_call.1} parent=1 // pred_check
      _
    $region15: #{tpu_custom_call.1} parent=1 // pred_check_branch
      %38 = sbr.rel (0) target = $region17
    $region16: #{tpu_custom_call.1} parent=1 // pred_region
      %39 = dma.done [#allocation3], 256
    $region17: #{tpu_custom_call.1} parent=1 // pred_fallthru
      _
    // Predicated region
    $region18: #{tpu_custom_call.1} parent=1 // pred_check
      _
    $region19: #{tpu_custom_call.1} parent=1 // pred_check_branch
      %41 = sbr.rel (0) target = $region21
    $region20: #{tpu_custom_call.1} parent=1 // pred_region
      %42 = dma.done [#allocation6], 512
    $region21: #{tpu_custom_call.1} parent=1 // pred_fallthru
      _
    %v43 = vld [vmem:[#allocation2] sm:$0xff]
    %v44 = vld [vmem:[#allocation2 + $0x8] sm:$0xff]
    %v45 = vld [vmem:[#allocation5] sm:$0xff]
    %v46 = vld [vmem:[#allocation5 + $0x8] sm:$0xff]
    %v47 = vld [vmem:[#allocation5 + $0x10] sm:$0xff]
    %v48 = vld [vmem:[#allocation5 + $0x18] sm:$0xff]
    %v49 = vld [vmem:[%s2] sm:$0x1]
    %v51 = vlaneseq
    %v52 = vshrl.u32 %v51, 7
    %v53 = vsub.s32 0, %v52
    %v54 = vrot.slane %v49, %v53
    %vm56 = vcmask 261120
    %v58 = vsel %vm56, %v43, 0
    %v61 = vsel %vm56, %v44, 0
    %63 = vmatprep.subr.mxu0 0.0
    %64 = vmatpush1.msra.mxu0 0.0
    %65 = vmatprep.subr.mxu0 0.0
    %66 = vmatpush1.msra.mxu0 0.0
    %67 = vmatprep.subr.mxu0 0.0
    %68 = vmatpush1.msra.mxu0 0.0
    %69 = vmatprep.subr.mxu0 0.0
    %70 = vmatpush1.msra.mxu0 0.0
    %71 = vmatprep.subr.mxu0 0.0
    %72 = vmatpush1.msra.mxu0 0.0
    %73 = vmatprep.subr.mxu0 0.0
    %74 = vmatpush1.msra.mxu0 0.0
    %75 = vmatprep.subr.mxu0 0.0
    %76 = vmatpush1.msra.mxu0 0.0
    %77 = vmatprep.subr.mxu0 0.0
    %78 = vmatpush1.msra.mxu0 0.0
    %79 = vmatprep.subr.mxu0 0.0
    %80 = vmatpush1.msra.mxu0 0.0
    %81 = vmatprep.subr.mxu0 0.0
    %82 = vmatpush1.msra.mxu0 0.0
    %83 = vmatprep.subr.mxu0 0.0
    %84 = vmatpush1.msra.mxu0 0.0
    %85 = vmatprep.subr.mxu0 0.0
    %86 = vmatpush1.msra.mxu0 0.0
    %87 = vmatprep.subr.mxu0 0.0
    %88 = vmatpush1.msra.mxu0 %v48
    %89 = vmatprep.subr.mxu0 0.0
    %90 = vmatpush1.msra.mxu0 %v47
    %91 = vmatprep.subr.mxu0 0.0
    %92 = vmatpush1.msra.mxu0 %v46
    %93 = vmatprep.subr.mxu0 0.0
    %94 = vmatpush1.msra.mxu0 %v45
    %95 = vmatprep.subr.mxu0 0.0
    %96 = vmatpush2.msra.mxu0 0.0
    %97 = vmatprep.subr.mxu0 0.0
    %98 = vmatpush2.msra.mxu0 0.0
    %99 = vmatprep.subr.mxu0 0.0
    %100 = vmatpush2.msra.mxu0 0.0
    %101 = vmatprep.subr.mxu0 0.0
    %102 = vmatpush2.msra.mxu0 0.0
    %103 = vmatprep.subr.mxu0 0.0
    %104 = vmatpush2.msra.mxu0 0.0
    %105 = vmatprep.subr.mxu0 0.0
    %106 = vmatpush2.msra.mxu0 0.0
    %107 = vmatprep.subr.mxu0 0.0
    %108 = vmatpush2.msra.mxu0 0.0
    %109 = vmatprep.subr.mxu0 0.0
    %110 = vmatpush2.msra.mxu0 0.0
    %111 = vmatprep.subr.mxu0 0.0
    %112 = vmatpush2.msra.mxu0 0.0
    %113 = vmatprep.subr.mxu0 0.0
    %114 = vmatpush2.msra.mxu0 0.0
    %115 = vmatprep.subr.mxu0 0.0
    %116 = vmatpush2.msra.mxu0 0.0
    %117 = vmatprep.subr.mxu0 0.0
    %118 = vmatpush2.msra.mxu0 0.0
    %119 = vmatprep.subr.mxu0 0.0
    %120 = vmatpush2.msra.mxu0 0.0
    %121 = vmatprep.subr.mxu0 0.0
    %122 = vmatpush2.msra.mxu0 0.0
    %123 = vmatprep.subr.mxu0 0.0
    %124 = vmatpush2.msra.mxu0 0.0
    %125 = vmatprep.subr.mxu0 0.0
    %126 = vmatpush2.msra.mxu0 0.0
    %127 = vmatprep.mubr.f32.mxu0 0.0
    %128 = vmatmul.mubr.f32.gmra.mxu0 %v58
    %v129 = vpop.f32.mrf.mxu0
    %v130 = vadd.f32 %v54, %v129
    %v131 = vpop.f32.mrf.mxu0
    %132 = vmatprep.mubr.f32.mxu0 0.0
    %133 = vmatmul.mubr.f32.gmra.mxu0 %v61
    %v134 = vpop.f32.mrf.mxu0
    %v135 = vadd.f32 %v54, %v134
    %v136 = vpop.f32.mrf.mxu0
    %137 = vdwg.mxu0
    %vm138 = vcmask 785408
    %139 = vst.msk [vmem:[#allocation7] sm:$0xff] %vm138, %v130
    %140 = vst.msk [vmem:[#allocation7 + $0x8] sm:$0xff] %vm138, %v135
    // Predicated region
    $region22: #{tpu_custom_call.1} parent=1 // pred_check
      _
    $region23: #{tpu_custom_call.1} parent=1 // pred_check_branch
      %142 = sbr.rel (0) target = $region25
    $region24: #{tpu_custom_call.1} parent=1 // pred_region
      %s144 = ssub.s32 256, 256
      %145 = vsyncadd [#allocation4], %s144
      %s146 = sshll.u32 [#allocation7], 4
      %s147 = int_to_ptr.vmem [resolvable:$true] %s146
      %152 = dma.vmem_to_hbm [thread:$0]  %s147, 256, %s3, [#allocation4], 128, 128, 8
    $region25: #{tpu_custom_call.1} parent=1 // pred_fallthru
      _
    // Predicated region
    $region26: #{tpu_custom_call.1} parent=1 // pred_check
      _
    $region27: #{tpu_custom_call.1} parent=1 // pred_check_branch
      %154 = sbr.rel (0) target = $region29
    $region28: #{tpu_custom_call.1} parent=1 // pred_region
      %155 = dma.done [#allocation4], 256
    $region29: #{tpu_custom_call.1} parent=1 // pred_fallthru
      _
    %156 = vsyncpa [#allocation3], 1
    %157 = vsyncpa [#allocation6], 1
    %158 = vsyncpa [#allocation4], 1

</llo_original>
